<compile_context>
chip_gen: v7x
topology: tpu7x:2x2x1
jax: 0.10.0
libtpu: 0.0.40
codegen_flags: <defaults>
</compile_context>

<pallas_src>
import jax
import jax.numpy as jnp
from jax.experimental import pallas as pl
from jax.experimental.pallas import tpu as pltpu

H1 = 512        # 128 (pi1) + 256 (v1) + carrier lane + pad -> 512 lanes
H2 = 256        # 64 (pi2) + 128 (v2) + carrier lane + pad -> 256 lanes
H3 = 128        # n_actions + 1 (value) + pad -> 128 lanes
C1 = 384        # carrier-lane index in layer-1 activations
C2 = 192        # carrier-lane index in layer-2 activations
MAX_TB = 128    # batch tile (rows per grid step)


def _round_up(n, m):
    return ((n + m - 1) // m) * m


def actor_critic_kernel(x_ref, w1_ref, w2_ref, w3_ref, out_ref):
    # Layer 1: [pi1 | v1 | carrier] fused; biases arrive via the ones column.
    h = jnp.dot(x_ref[...], w1_ref[...], preferred_element_type=jnp.float32)
    h = jnp.maximum(h, 0.0).astype(jnp.bfloat16)              # (TB, 512)
    # Layer 2: block-diagonal [pi2 | v2 | carrier]; biases via carrier lane C1.
    h = jnp.dot(h, w2_ref[...], preferred_element_type=jnp.float32)
    h = jnp.maximum(h, 0.0).astype(jnp.bfloat16)              # (TB, 256)
    # Layer 3: block-diagonal [pi | v | 0-pad]; biases via carrier lane C2.
    out_ref[...] = jnp.dot(h, w3_ref[...], preferred_element_type=jnp.float32)


def actor_critic_forward(x, packed, n_actions):
    """x: (B, input_dim) f32. Returns (pi (B, n_actions), v (B, 1)) in f32."""
    B, input_dim = x.shape
    d_pad = packed["W1"].shape[0]
    ones_col = input_dim                   # must match pack_params convention

    # Host-side layout plumbing: pad features, add ones column, pad batch to a
    # multiple of the batch tile, cast to bf16 for the MXU.
    tb = min(MAX_TB, _round_up(B, 8))
    b_pad = _round_up(B, tb)
    x_pad = jnp.zeros((b_pad, d_pad), jnp.float32)
    x_pad = x_pad.at[:B, :input_dim].set(x)
    x_pad = x_pad.at[:B, ones_col].set(1.0)
    x_pad = x_pad.astype(jnp.bfloat16)

    out = pl.pallas_call(
        actor_critic_kernel,
        out_shape=jax.ShapeDtypeStruct((b_pad, H3), jnp.float32),
        grid=(b_pad // tb,),
        in_specs=[
            pl.BlockSpec((tb, d_pad), lambda i: (i, 0)),     # streamed per step
            pl.BlockSpec((d_pad, H1), lambda i: (0, 0)),     # weights resident
            pl.BlockSpec((H1, H2), lambda i: (0, 0)),        # (fetched once)
            pl.BlockSpec((H2, H3), lambda i: (0, 0)),
        ],
        out_specs=pl.BlockSpec((tb, H3), lambda i: (i, 0)),  # lane-dense slab
        compiler_params=pltpu.CompilerParams(
            dimension_semantics=("parallel",)),              # megacore on v7x
    )(x_pad, packed["W1"], packed["W2"], packed["W3"])

    pi = out[:B, :n_actions]
    v = out[:B, n_actions:n_actions + 1]
    return pi, v


def make_params(key, input_dim, n_actions):
    """Deterministic init matching nn.Linear shapes; weights stored as (in, out)."""
    dims = {
        "p1": (input_dim, 128),
        "p2": (128, 64),
        "p3": (64, n_actions),
        "v1": (input_dim, 256),
        "v2": (256, 128),
        "v3": (128, 1),
    }
    params = {}
    keys = jax.random.split(key, 2 * len(dims))
    for i, (name, (fan_in, fan_out)) in enumerate(dims.items()):
        bound = 1.0 / jnp.sqrt(jnp.float32(fan_in))
        w = jax.random.uniform(
            keys[2 * i], (fan_in, fan_out), jnp.float32, -bound, bound)
        b = jax.random.uniform(
            keys[2 * i + 1], (1, fan_out), jnp.float32, -bound, bound)
        prefix = "p" if name[0] == "p" else "v"
        params[prefix + "w" + name[1]] = w
        params[prefix + "b" + name[1]] = b
    return params


def pack_params(p, input_dim, n_actions):
    """Fuse policy/value weights + biases into three bf16 lane-aligned buffers.

    Bias/carrier trick: x carries a constant-1 column at index `input_dim`;
    W1 row `input_dim` holds layer-1 biases and feeds carrier lane C1 (stays 1
    through relu), W2 row C1 holds layer-2 biases and feeds carrier lane C2,
    W3 row C2 holds layer-3 biases.  All biases enter via the MXU.
    """
    assert n_actions + 1 <= H3, "n_actions + 1 must fit in the 128-lane output"
    d_pad = _round_up(input_dim + 1, 8)
    ones_col = input_dim

    # Layer 1: [pi1 | v1 | carrier | 0-pad], (d_pad, 512).
    W1 = jnp.zeros((d_pad, H1), jnp.float32)
    W1 = W1.at[:input_dim, 0:128].set(p["pw1"])
    W1 = W1.at[:input_dim, 128:384].set(p["vw1"])
    W1 = W1.at[ones_col, 0:128].set(p["pb1"][0])
    W1 = W1.at[ones_col, 128:384].set(p["vb1"][0])
    W1 = W1.at[ones_col, C1].set(1.0)

    # Layer 2: block-diagonal [pi2 | v2 | carrier | 0-pad], (512, 256).
    W2 = jnp.zeros((H1, H2), jnp.float32)
    W2 = W2.at[0:128, 0:64].set(p["pw2"])
    W2 = W2.at[128:384, 64:192].set(p["vw2"])
    W2 = W2.at[C1, 0:64].set(p["pb2"][0])
    W2 = W2.at[C1, 64:192].set(p["vb2"][0])
    W2 = W2.at[C1, C2].set(1.0)

    # Layer 3: block-diagonal [pi | v | 0-pad], (256, 128).
    W3 = jnp.zeros((H2, H3), jnp.float32)
    W3 = W3.at[0:64, 0:n_actions].set(p["pw3"])
    W3 = W3.at[64:192, n_actions:n_actions + 1].set(p["vw3"])
    W3 = W3.at[C2, 0:n_actions].set(p["pb3"][0])
    W3 = W3.at[C2, n_actions].set(p["vb3"][0, 0])

    return {"W1": W1.astype(jnp.bfloat16),
            "W2": W2.astype(jnp.bfloat16),
            "W3": W3.astype(jnp.bfloat16)}


def reference_forward(x, p):
    h = jnp.maximum(x @ p["pw1"] + p["pb1"], 0.0)
    h = jnp.maximum(h @ p["pw2"] + p["pb2"], 0.0)
    pi = h @ p["pw3"] + p["pb3"]
    g = jnp.maximum(x @ p["vw1"] + p["vb1"], 0.0)
    g = jnp.maximum(g @ p["vw2"] + p["vb2"], 0.0)
    v = g @ p["vw3"] + p["vb3"]
    return pi, v


if __name__ == "__main__":
    input_dim = 4    # CartPole observation dim
    n_actions = 2    # CartPole action space
    batch = 256      # vectorized-envs / consolidated-rollout batch (feeds MXU)

    key = jax.random.PRNGKey(0)
    k_params, k_x = jax.random.split(key)
    params = make_params(k_params, input_dim, n_actions)
    packed = pack_params(params, input_dim, n_actions)

    x = jax.random.normal(k_x, (batch, input_dim), jnp.float32)
    pi, v = actor_critic_forward(x, packed, n_actions)
    jax.block_until_ready((pi, v))

    pi_ref, v_ref = reference_forward(x, params)
    assert pi.shape == (batch, n_actions) and v.shape == (batch, 1)
    # bf16 operands (f32 accumulation) -> relaxed tolerance vs. f32 reference.
    assert jnp.allclose(pi, pi_ref, atol=3e-2, rtol=3e-2), float(
        jnp.max(jnp.abs(pi - pi_ref)))
    assert jnp.allclose(v, v_ref, atol=3e-2, rtol=3e-2), float(
        jnp.max(jnp.abs(v - v_ref)))

    # Small / non-multiple batch path (single-env choose_action style call).
    x_small = jax.random.normal(jax.random.PRNGKey(1), (6, input_dim),
                                jnp.float32)
    pi_s, v_s = actor_critic_forward(x_small, packed, n_actions)
    jax.block_until_ready((pi_s, v_s))
    pi_sr, v_sr = reference_forward(x_small, params)
    assert pi_s.shape == (6, n_actions) and v_s.shape == (6, 1)
    assert jnp.allclose(pi_s, pi_sr, atol=3e-2, rtol=3e-2)
    assert jnp.allclose(v_s, v_sr, atol=3e-2, rtol=3e-2)

    print("KERNEL_OK")
</pallas_src>

<mosaic_0001>
module attributes {stable_mosaic.version = 11 : i64} {
  func.func @actor_critic_kernel(%arg0: i32, %arg1: memref<128x8xbf16, #tpu.memory_space<vmem>>, %arg2: memref<8x512xbf16, #tpu.memory_space<vmem>>, %arg3: memref<512x256xbf16, #tpu.memory_space<vmem>>, %arg4: memref<256x128xbf16, #tpu.memory_space<vmem>>, %arg5: memref<128x128xf32, #tpu.memory_space<vmem>>) attributes {dimension_semantics = [#tpu.dimension_semantics<parallel>], iteration_bounds = array<i64: 2>, scalar_prefetch = 0 : i64, scratch_operands = 0 : i64, tpu.core_type = #tpu.core_type<tc>, window_params = [{transform_indices = @transform_0, window_bounds = array<i64: 128, 8>}, {pipeline_mode = #tpu.pipeline_mode<synchronous>, transform_indices = @transform_1, window_bounds = array<i64: 8, 512>}, {pipeline_mode = #tpu.pipeline_mode<synchronous>, transform_indices = @transform_2, window_bounds = array<i64: 512, 256>}, {pipeline_mode = #tpu.pipeline_mode<synchronous>, transform_indices = @transform_3, window_bounds = array<i64: 256, 128>}, {transform_indices = @transform_4, window_bounds = array<i64: 128, 128>}]} {
    %c0 = arith.constant 0 : index
    %c0_0 = arith.constant 0 : index
    %0 = vector.load %arg1[%c0, %c0_0] : memref<128x8xbf16, #tpu.memory_space<vmem>>, vector<128x8xbf16>
    %c0_1 = arith.constant 0 : index
    %c0_2 = arith.constant 0 : index
    %1 = vector.load %arg2[%c0_1, %c0_2] : memref<8x512xbf16, #tpu.memory_space<vmem>>, vector<8x512xbf16>
    %cst = arith.constant dense<0.000000e+00> : vector<128x512xf32>
    %2 = tpu.matmul %0, %1, %cst {dimension_numbers = #tpu.dot_dimension_numbers<[1], [0], [0], [1], [0, 0, 1, 1], [], []>} : vector<128x8xbf16>, vector<8x512xbf16>, vector<128x512xf32> -> vector<128x512xf32>
    %cst_3 = arith.constant 0.000000e+00 : f32
    %3 = vector.broadcast %cst_3 : f32 to vector<128x512xf32>
    %4 = arith.maximumf %2, %3 : vector<128x512xf32>
    %5 = arith.truncf %4 : vector<128x512xf32> to vector<128x512xbf16>
    %c0_4 = arith.constant 0 : index
    %c0_5 = arith.constant 0 : index
    %6 = vector.load %arg3[%c0_4, %c0_5] : memref<512x256xbf16, #tpu.memory_space<vmem>>, vector<512x256xbf16>
    %cst_6 = arith.constant dense<0.000000e+00> : vector<128x256xf32>
    %7 = tpu.matmul %5, %6, %cst_6 {dimension_numbers = #tpu.dot_dimension_numbers<[1], [0], [0], [1], [0, 0, 1, 1], [], []>} : vector<128x512xbf16>, vector<512x256xbf16>, vector<128x256xf32> -> vector<128x256xf32>
    %cst_7 = arith.constant 0.000000e+00 : f32
    %8 = vector.broadcast %cst_7 : f32 to vector<128x256xf32>
    %9 = arith.maximumf %7, %8 : vector<128x256xf32>
    %10 = arith.truncf %9 : vector<128x256xf32> to vector<128x256xbf16>
    %c0_8 = arith.constant 0 : index
    %c0_9 = arith.constant 0 : index
    %11 = vector.load %arg4[%c0_8, %c0_9] : memref<256x128xbf16, #tpu.memory_space<vmem>>, vector<256x128xbf16>
    %cst_10 = arith.constant dense<0.000000e+00> : vector<128x128xf32>
    %12 = tpu.matmul %10, %11, %cst_10 {dimension_numbers = #tpu.dot_dimension_numbers<[1], [0], [0], [1], [0, 0, 1, 1], [], []>} : vector<128x256xbf16>, vector<256x128xbf16>, vector<128x128xf32> -> vector<128x128xf32>
    %c0_11 = arith.constant 0 : index
    %c0_12 = arith.constant 0 : index
    %13 = vector.load %arg5[%c0_11, %c0_12] : memref<128x128xf32, #tpu.memory_space<vmem>>, vector<128x128xf32>
    tpu.vector_store %arg5[%c0_11, %c0_12], %12 {strides = array<i32>} : memref<128x128xf32, #tpu.memory_space<vmem>>, vector<128x128xf32>,
    return
  }
  func.func @transform_0(%arg0: i32) -> (i32, i32) {
    %c0_i32 = arith.constant 0 : i32
    %c0_i32_0 = arith.constant 0 : i32
    return %arg0, %c0_i32 : i32, i32
  }
  func.func @transform_1(%arg0: i32) -> (i32, i32) {
    %c0_i32 = arith.constant 0 : i32
    %c0_i32_0 = arith.constant 0 : i32
    %c0_i32_1 = arith.constant 0 : i32
    return %c0_i32, %c0_i32_0 : i32, i32
  }
  func.func @transform_2(%arg0: i32) -> (i32, i32) {
    %c0_i32 = arith.constant 0 : i32
    %c0_i32_0 = arith.constant 0 : i32
    %c0_i32_1 = arith.constant 0 : i32
    return %c0_i32, %c0_i32_0 : i32, i32
  }
  func.func @transform_3(%arg0: i32) -> (i32, i32) {
    %c0_i32 = arith.constant 0 : i32
    %c0_i32_0 = arith.constant 0 : i32
    %c0_i32_1 = arith.constant 0 : i32
    return %c0_i32, %c0_i32_0 : i32, i32
  }
  func.func @transform_4(%arg0: i32) -> (i32, i32) {
    %c0_i32 = arith.constant 0 : i32
    %c0_i32_0 = arith.constant 0 : i32
    return %arg0, %c0_i32 : i32, i32
  }
}

</mosaic_0001>

<llo_original>
// kernel: tpu_custom_call.1
$region0: #{tpu_custom_call.1}
  #allocation0 [shape = 'u32[]', space=smem, size = 0x4, offset = 0x4, fixed_abs, tag = 'smem constant byte address 0x4 - core index']
  #allocation1 [shape = 'u32[144,128]{1,0:T(1,128)}', space=vmem, size = 0x12000, scoped, tag = 'internal scratch']
  %s0 = inlined_call_operand.vmem [shape: bf16[256,8], index: 0, kind: input, shape index: {}]
  %s1 = inlined_call_operand.vmem [shape: bf16[8,512], index: 1, kind: input, shape index: {}]
  %s2 = inlined_call_operand.hbm [shape: bf16[512,256], index: 2, kind: input, shape index: {}]
  %s3 = inlined_call_operand.vmem [shape: bf16[256,128], index: 3, kind: input, shape index: {}]
  %s4 = inlined_call_operand.hbm [shape: f32[256,128], index: 4, kind: output, shape index: {}]
  %s5 = sld [smem:[#allocation0]]
  $region53: #{tpu_custom_call.1} parent=0
    _
  %s7 = ssub.s32 1, %s5
  %s8 = scalar_select 0, %s7, %s5
  $region1: #{tpu_custom_call.1} parent=0
    #allocation2 [shape = 'u8[262144]{0}', space=vmem, size = 0x40000, scoped, tag = 'input window, operand 2, single buffered']
    #allocation3 [shape = 's32[2]{0}', space=sflag, size = 0x8, scoped, tag = 'scoped memory for tpu_custom_call.1']
    #allocation4 [shape = 's32[2]{0}', space=sflag, size = 0x8, scoped, tag = 'scoped memory for tpu_custom_call.1']
    #allocation5 [shape = 'u8[131072]{0}', space=vmem, size = 0x20000, scoped, tag = 'output window, operand 0']
    %9 = vsyncpa [#allocation3], 0
    %10 = vsyncpa [#allocation4], 0
    %s11 = scalar_lea.sflag [#allocation4], 1
    %12 = vsyncpa %s11, 0
    loop: start=0, step=1, limit=4
    $region2: #{tpu_custom_call.1} parent=1 // loop_pre_header
      _
    $region3: #{tpu_custom_call.1} parent=1 // loop_header
      %s14 = sphi 0, %s18
      %p15 = scmp.ge.s32.totalorder %s14, 4
      %s24 = sphi 0, %s26
      %s27 = sphi 0, %s24
      %s28 = sphi 0, %s27
      %s44 = sphi 0, %s28
      %s48 = sphi 0, %s48
      %s50 = sphi 0, %s48
      %s51 = sphi 0, %s50
      %s65 = sphi 0, %s51
      %s69 = sphi 0, %s69
      %s71 = sphi 0, %s69
      %s72 = sphi 0, %s71
      %s86 = sphi 0, %s72
      %s90 = sphi 0, %s90
      %s92 = sphi 0, %s90
      %s93 = sphi 0, %s92
      %s107 = sphi 0, %s93
      %s113 = sphi 0, %s115
      %s116 = sphi 0, %s113
      %s117 = sphi 0, %s116
      %s133 = sphi 0, %s117
    $region4: #{tpu_custom_call.1} parent=1 // loop_header_branch
      %17 = sbr.rel (%p15) target = $region8
    $region5: #{tpu_custom_call.1} parent=1 // loop_body
      %s19 = ssub.s32 %s14, 1
      %s20 = ssub.s32 %s14, 2
      %s21 = sadd.s32 %s14, 1
      %s22 = ssub.s32 %s14, %s21
      %p23 = scmp.eq.s32.totalorder %s22, 0
      %s25 = sadd.s32 %s24, 1
      %s26 = scalar_select %p23, %s24, %s25
      %p29 = pneg %p23
      %p30 = scmp.eq.s32.totalorder %s14, 1
      %p31 = por %p29, %p30
      %p32 = scmp.ne.s32.totalorder %s24, %s27
      %p33 = scmp.eq.s32.totalorder %s14, 0
      %p34 = por %p32, %p33
      %p35 = scmp.ne.s32.totalorder %s24, %s27
      %p36 = scmp.eq.s32.totalorder %s19, 1
      %p37 = por %p35, %p36
      %p38 = scmp.ne.s32.totalorder %s27, %s28
      %p39 = scmp.eq.s32.totalorder %s19, 0
      %p40 = por %p38, %p39
      %p41 = scmp.ne.s32.totalorder %s27, %s28
      %p42 = scmp.eq.s32.totalorder %s20, 1
      %p43 = por %p41, %p42
      %p45 = scmp.ne.s32.totalorder %s28, %s44
      %p46 = scmp.eq.s32.totalorder %s20, 0
      %p47 = por %p45, %p46
      %s49 = sadd.s32 %s48, 1
      %p52 = scmp.eq.s32.totalorder %s14, 1
      %p53 = scmp.ne.s32.totalorder %s48, %s50
      %p54 = scmp.eq.s32.totalorder %s14, 0
      %p55 = por %p53, %p54
      %p56 = scmp.ne.s32.totalorder %s48, %s50
      %p57 = scmp.eq.s32.totalorder %s19, 1
      %p58 = por %p56, %p57
      %p59 = scmp.ne.s32.totalorder %s50, %s51
      %p60 = scmp.eq.s32.totalorder %s19, 0
      %p61 = por %p59, %p60
      %p62 = scmp.ne.s32.totalorder %s50, %s51
      %p63 = scmp.eq.s32.totalorder %s20, 1
      %p64 = por %p62, %p63
      %p66 = scmp.ne.s32.totalorder %s51, %s65
      %p67 = scmp.eq.s32.totalorder %s20, 0
      %p68 = por %p66, %p67
      %s70 = sadd.s32 %s69, 1
      %p73 = scmp.eq.s32.totalorder %s14, 1
      %p74 = scmp.ne.s32.totalorder %s69, %s71
      %p75 = scmp.eq.s32.totalorder %s14, 0
      %p76 = por %p74, %p75
      %p77 = scmp.ne.s32.totalorder %s69, %s71
      %p78 = scmp.eq.s32.totalorder %s19, 1
      %p79 = por %p77, %p78
      %p80 = scmp.ne.s32.totalorder %s71, %s72
      %p81 = scmp.eq.s32.totalorder %s19, 0
      %p82 = por %p80, %p81
      %p83 = scmp.ne.s32.totalorder %s71, %s72
      %p84 = scmp.eq.s32.totalorder %s20, 1
      %p85 = por %p83, %p84
      %p87 = scmp.ne.s32.totalorder %s72, %s86
      %p88 = scmp.eq.s32.totalorder %s20, 0
      %p89 = por %p87, %p88
      %s91 = sadd.s32 %s90, 1
      %p94 = scmp.eq.s32.totalorder %s14, 1
      %p95 = scmp.ne.s32.totalorder %s90, %s92
      %p96 = scmp.eq.s32.totalorder %s14, 0
      %p97 = por %p95, %p96
      %p98 = scmp.ne.s32.totalorder %s90, %s92
      %p99 = scmp.eq.s32.totalorder %s19, 1
      %p100 = por %p98, %p99
      %p101 = scmp.ne.s32.totalorder %s92, %s93
      %p102 = scmp.eq.s32.totalorder %s19, 0
      %p103 = por %p101, %p102
      %p104 = scmp.ne.s32.totalorder %s92, %s93
      %p105 = scmp.eq.s32.totalorder %s20, 1
      %p106 = por %p104, %p105
      %p108 = scmp.ne.s32.totalorder %s93, %s107
      %p109 = scmp.eq.s32.totalorder %s20, 0
      %p110 = por %p108, %p109
      %s111 = ssub.s32 %s14, %s21
      %p112 = scmp.eq.s32.totalorder %s111, 0
      %s114 = sadd.s32 %s113, 1
      %s115 = scalar_select %p112, %s113, %s114
      %p118 = pneg %p112
      %p119 = scmp.eq.s32.totalorder %s14, 1
      %p120 = por %p118, %p119
      %p121 = scmp.ne.s32.totalorder %s113, %s116
      %p122 = scmp.eq.s32.totalorder %s14, 0
      %p123 = por %p121, %p122
      %p124 = scmp.ne.s32.totalorder %s113, %s116
      %p125 = scmp.eq.s32.totalorder %s19, 1
      %p126 = por %p124, %p125
      %p127 = scmp.ne.s32.totalorder %s116, %s117
      %p128 = scmp.eq.s32.totalorder %s19, 0
      %p129 = por %p127, %p128
      %p130 = scmp.ne.s32.totalorder %s116, %s117
      %p131 = scmp.eq.s32.totalorder %s20, 1
      %p132 = por %p130, %p131
      %p134 = scmp.ne.s32.totalorder %s117, %s133
      %p135 = scmp.eq.s32.totalorder %s20, 0
      %p136 = por %p134, %p135
      %p137 = scmp.le.s32.totalorder 1, %s14
      %p138 = scmp.lt.s32.totalorder %s14, 3
      %p139 = pnand %p137, %p138
      %p140 = pneg %p139
      // Predicated region
      $region9: #{tpu_custom_call.1} parent=5 // pred_check
        _
      $region10: #{tpu_custom_call.1} parent=5 // pred_check_branch
        %142 = sbr.rel (%p139) target = $region12
      $region11: #{tpu_custom_call.1} parent=5 // pred_region
        %s143 = ssub.s32 %s14, 1
        // Predicated region
        $region13: #{tpu_custom_call.1} parent=11 // pred_check
          %p144 = pneg %p61
        $region14: #{tpu_custom_call.1} parent=11 // pred_check_branch
          %146 = sbr.rel (%p144) target = $region16
        $region15: #{tpu_custom_call.1} parent=11 // pred_region
          _
        $region16: #{tpu_custom_call.1} parent=11 // pred_fallthru
          _
        // Predicated region
        $region17: #{tpu_custom_call.1} parent=11 // pred_check
          %p147 = pneg %p82
        $region18: #{tpu_custom_call.1} parent=11 // pred_check_branch
          %149 = sbr.rel (%p147) target = $region20
        $region19: #{tpu_custom_call.1} parent=11 // pred_region
          %s151 = ssub.s32 8192, 8192
          %152 = vsyncadd [#allocation3], %s151
          %s153 = sshll.u32 [#allocation2], 4
          %s154 = int_to_ptr.vmem [resolvable:$true] %s153
          %159 = dma.hbm_to_vmem [thread:$0]  %s2, 8192, %s154, [#allocation3], 128, 128, 8
        $region20: #{tpu_custom_call.1} parent=11 // pred_fallthru
          _
        // Predicated region
        $region21: #{tpu_custom_call.1} parent=11 // pred_check
          %p160 = pneg %p103
        $region22: #{tpu_custom_call.1} parent=11 // pred_check_branch
          %162 = sbr.rel (%p160) target = $region24
        $region23: #{tpu_custom_call.1} parent=11 // pred_region
          _
        $region24: #{tpu_custom_call.1} parent=11 // pred_fallthru
          _
      $region12: #{tpu_custom_call.1} parent=5 // pred_fallthru
        _
      %p163 = scmp.lt.s32.totalorder %s14, 2
      // Predicated region
      $region25: #{tpu_custom_call.1} parent=5 // pred_check
        %p164 = pneg %p163
      $region26: #{tpu_custom_call.1} parent=5 // pred_check_branch
        %166 = sbr.rel (%p164) target = $region28
      $region27: #{tpu_custom_call.1} parent=5 // pred_region
        // Predicated region
        $region29: #{tpu_custom_call.1} parent=27 // pred_check
          %p167 = pneg %p34
        $region30: #{tpu_custom_call.1} parent=27 // pred_check_branch
          %169 = sbr.rel (%p167) target = $region32
        $region31: #{tpu_custom_call.1} parent=27 // pred_region
          %s170 = smul.u32 16, %s14
          %p171 = scmp.lt.s32.totalorder %s170, 31
          %s172 = scalar_select %p171, %s170, 31
          %s173 = smul.addr %s172, 4
          %s174 = scalar_lea.vmem %s0, %s173
          %s175 = smul.u32 16, %s14
        $region32: #{tpu_custom_call.1} parent=27 // pred_fallthru
          _
      $region28: #{tpu_custom_call.1} parent=5 // pred_fallthru
        _
      %p176 = scmp.le.s32.totalorder 1, %s14
      %p177 = scmp.lt.s32.totalorder %s14, 3
      %p178 = pnand %p176, %p177
      %p179 = pneg %p178
      // Predicated region
      $region33: #{tpu_custom_call.1} parent=5 // pred_check
        _
      $region34: #{tpu_custom_call.1} parent=5 // pred_check_branch
        %181 = sbr.rel (%p178) target = $region36
      $region35: #{tpu_custom_call.1} parent=5 // pred_region
        %s182 = ssub.s32 %s14, 1
        // Predicated region
        $region37: #{tpu_custom_call.1} parent=35 // pred_check
          %p183 = pneg %p82
        $region38: #{tpu_custom_call.1} parent=35 // pred_check_branch
          %185 = sbr.rel (%p183) target = $region40
        $region39: #{tpu_custom_call.1} parent=35 // pred_region
          %186 = dma.done [#allocation3], 8192
        $region40: #{tpu_custom_call.1} parent=35 // pred_fallthru
          _
        %s187 = smul.u32 16, %s19
        %p188 = scmp.lt.s32.totalorder %s187, 31
        %s189 = scalar_select %p188, %s187, 31
        %s190 = smul.addr %s189, 4
        %s191 = scalar_lea.vmem %s0, %s190
        %p192 = pneg %p40
        %p193 = pneg %p37
        %p194 = pneg %p61
        %p195 = pneg %p58
        %p196 = pneg %p82
        %p197 = pneg %p79
        %p198 = pneg %p103
        %p199 = pneg %p100
        %p200 = pneg %p129
        %p201 = pneg %p126
        %s202 = sand.u32 %s116, 1
        %s203 = scalar_lea.sflag [#allocation4], %s202
        %s204 = sand.u32 %s116, 1
        %s205 = smul.addr %s204, 128
        %s206 = scalar_lea.vmem [#allocation5], %s205
        %s207 = smul.u32 16, %s19
        %p208 = scmp.lt.s32.totalorder %s207, 31
        %s209 = scalar_select %p208, %s207, 31
        %s210 = smul.addr %s209, 4
        %s211 = scalar_lea.vmem %s0, %s210
        %s212 = smul.u32 16, %s19
        %s213 = smul.u32 16, %s19
        %v215 = vld [vmem:[%s211] sm:$0xf]
        %v216 = vld [vmem:[%s211 + $0x4] sm:$0xf]
        %v217 = vld [vmem:[%s211 + $0x8] sm:$0xf]
        %v218 = vld [vmem:[%s211 + $0xc] sm:$0xf]
        %v219 = vld [vmem:[%s211 + $0x10] sm:$0xf]
        %v220 = vld [vmem:[%s211 + $0x14] sm:$0xf]
        %v221 = vld [vmem:[%s211 + $0x18] sm:$0xf]
        %v222 = vld [vmem:[%s211 + $0x1c] sm:$0xf]
        %v223 = vld [vmem:[%s211 + $0x20] sm:$0xf]
        %v224 = vld [vmem:[%s211 + $0x24] sm:$0xf]
        %v225 = vld [vmem:[%s211 + $0x28] sm:$0xf]
        %v226 = vld [vmem:[%s211 + $0x2c] sm:$0xf]
        %v227 = vld [vmem:[%s211 + $0x30] sm:$0xf]
        %v228 = vld [vmem:[%s211 + $0x34] sm:$0xf]
        %v229 = vld [vmem:[%s211 + $0x38] sm:$0xf]
        %v230 = vld [vmem:[%s211 + $0x3c] sm:$0xf]
        %v231 = vld [vmem:[%s1] sm:$0xff]
        %v232 = vld [vmem:[%s1 + $0x8] sm:$0xff]
        %v249 = vunpack.c.l.b16 %v215
        %v250 = vunpack.c.l.b16 %v216
        %v251 = vunpack.c.l.b16 %v217
        %v252 = vunpack.c.l.b16 %v218
        %v253 = vunpack.c.l.b16 %v219
        %v254 = vunpack.c.l.b16 %v220
        %v255 = vunpack.c.l.b16 %v221
        %v256 = vunpack.c.l.b16 %v222
        %v257 = vunpack.c.l.b16 %v223
        %v258 = vunpack.c.l.b16 %v224
        %v259 = vunpack.c.l.b16 %v225
        %v260 = vunpack.c.l.b16 %v226
        %v261 = vunpack.c.l.b16 %v227
        %v262 = vunpack.c.l.b16 %v228
        %v263 = vunpack.c.l.b16 %v229
        %v264 = vunpack.c.l.b16 %v230
        %v265 = vpack.c.b16 %v250, %v249
        %v266 = vpack.c.b16 %v252, %v251
        %v267 = vpack.c.b16 %v254, %v253
        %v268 = vpack.c.b16 %v256, %v255
        %v269 = vpack.c.b16 %v258, %v257
        %v270 = vpack.c.b16 %v260, %v259
        %v271 = vpack.c.b16 %v262, %v261
        %v272 = vpack.c.b16 %v264, %v263
        %v275 = vunpack.c.l.b16 %v231
        %v276 = vunpack.c.h.b16 %v231
        %v277 = vunpack.c.l.b16 %v232
        %v278 = vunpack.c.h.b16 %v232
        %v279 = vpack.c.b16 %v275, %v275
        %v280 = vpack.c.b16 %v276, %v276
        %v281 = vpack.c.b16 %v277, %v277
        %v282 = vpack.c.b16 %v278, %v278
        %vm283 = vcmask 64512
        %v285 = vsel %vm283, %v265, 0
        %v288 = vsel %vm283, %v266, 0
        %v291 = vsel %vm283, %v267, 0
        %v294 = vsel %vm283, %v268, 0
        %v297 = vsel %vm283, %v269, 0
        %v300 = vsel %vm283, %v270, 0
        %v303 = vsel %vm283, %v271, 0
        %v306 = vsel %vm283, %v272, 0
        %vm308 = vcmask 1043456
        %v310 = vsel %vm308, %v279, 0
        %v313 = vsel %vm308, %v280, 0
        %v316 = vsel %vm308, %v281, 0
        %v319 = vsel %vm308, %v282, 0
        %321 = vmatprep.subr.bf16.mxu0 %v313
        %322 = vmatpush1.bf16.msra.mxu0 %v310
        %323 = vmatprep.subr.bf16.mxu0 0
        %324 = vmatpush1.bf16.msra.mxu0 0
        %325 = vmatprep.subr.bf16.mxu0 0
        %326 = vmatpush1.bf16.msra.mxu0 0
        %327 = vmatprep.subr.bf16.mxu0 0
        %328 = vmatpush1.bf16.msra.mxu0 0
        %329 = vmatprep.subr.bf16.mxu0 0
        %330 = vmatpush1.bf16.msra.mxu0 0
        %331 = vmatprep.subr.bf16.mxu0 0
        %332 = vmatpush1.bf16.msra.mxu0 0
        %333 = vmatprep.subr.bf16.mxu0 0
        %334 = vmatpush1.bf16.msra.mxu0 0
        %335 = vmatprep.subr.bf16.mxu0 0
        %336 = vmatpush1.bf16.msra.mxu0 0
        %337 = vmatprep.subr.bf16.mxu0 0
        %338 = vmatpush1.bf16.msra.mxu0 0
        %339 = vmatprep.subr.bf16.mxu0 0
        %340 = vmatpush1.bf16.msra.mxu0 0
        %341 = vmatprep.subr.bf16.mxu0 0
        %342 = vmatpush1.bf16.msra.mxu0 0
        %343 = vmatprep.subr.bf16.mxu0 0
        %344 = vmatpush1.bf16.msra.mxu0 0
        %345 = vmatprep.subr.bf16.mxu0 0
        %346 = vmatpush1.bf16.msra.mxu0 0
        %347 = vmatprep.subr.bf16.mxu0 0
        %348 = vmatpush1.bf16.msra.mxu0 0
        %349 = vmatprep.subr.bf16.mxu0 0
        %350 = vmatpush1.bf16.msra.mxu0 0
        %351 = vmatprep.subr.bf16.mxu0 0
        %352 = vmatpush1.bf16.msra.mxu0 0
        %353 = vmatprep.mubr.bf16.mxu0 0
        %354 = vmatmul.mubr.bf16.gmra.mrb[0].mxu0 %v285
        %v355 = vpop.f32.mrb[0].mxu0
        %v356 = vadd.f32 0.0, %v355
        %v357 = vpop.f32.mrb[0].mxu0
        %v358 = vadd.f32 0.0, %v357
        %v359 = vpop.f32.mrb[0].mxu0
        %v360 = vadd.f32 0.0, %v359
        %v361 = vpop.f32.mrb[0].mxu0
        %v362 = vadd.f32 0.0, %v361
        %363 = vmatprep.mubr.bf16.mxu0 0
        %364 = vmatmul.mubr.bf16.gmra.mrb[0].mxu0 %v288
        %v365 = vpop.f32.mrb[0].mxu0
        %v366 = vadd.f32 0.0, %v365
        %v367 = vpop.f32.mrb[0].mxu0
        %v368 = vadd.f32 0.0, %v367
        %v369 = vpop.f32.mrb[0].mxu0
        %v370 = vadd.f32 0.0, %v369
        %v371 = vpop.f32.mrb[0].mxu0
        %v372 = vadd.f32 0.0, %v371
        %373 = vmatprep.mubr.bf16.mxu0 0
        %374 = vmatmul.mubr.bf16.gmra.mrb[0].mxu0 %v291
        %v375 = vpop.f32.mrb[0].mxu0
        %v376 = vadd.f32 0.0, %v375
        %v377 = vpop.f32.mrb[0].mxu0
        %v378 = vadd.f32 0.0, %v377
        %v379 = vpop.f32.mrb[0].mxu0
        %v380 = vadd.f32 0.0, %v379
        %v381 = vpop.f32.mrb[0].mxu0
        %v382 = vadd.f32 0.0, %v381
        %383 = vmatprep.mubr.bf16.mxu0 0
        %384 = vmatmul.mubr.bf16.gmra.mrb[0].mxu0 %v294
        %v385 = vpop.f32.mrb[0].mxu0
        %v386 = vadd.f32 0.0, %v385
        %v387 = vpop.f32.mrb[0].mxu0
        %v388 = vadd.f32 0.0, %v387
        %v389 = vpop.f32.mrb[0].mxu0
        %v390 = vadd.f32 0.0, %v389
        %v391 = vpop.f32.mrb[0].mxu0
        %v392 = vadd.f32 0.0, %v391
        %393 = vmatprep.mubr.bf16.mxu0 0
        %394 = vmatmul.mubr.bf16.gmra.mrb[0].mxu0 %v297
        %v395 = vpop.f32.mrb[0].mxu0
        %v396 = vadd.f32 0.0, %v395
        %v397 = vpop.f32.mrb[0].mxu0
        %v398 = vadd.f32 0.0, %v397
        %v399 = vpop.f32.mrb[0].mxu0
        %v400 = vadd.f32 0.0, %v399
        %v401 = vpop.f32.mrb[0].mxu0
        %v402 = vadd.f32 0.0, %v401
        %403 = vmatprep.mubr.bf16.mxu0 0
        %404 = vmatmul.mubr.bf16.gmra.mrb[0].mxu0 %v300
        %v405 = vpop.f32.mrb[0].mxu0
        %v406 = vadd.f32 0.0, %v405
        %v407 = vpop.f32.mrb[0].mxu0
        %v408 = vadd.f32 0.0, %v407
        %v409 = vpop.f32.mrb[0].mxu0
        %v410 = vadd.f32 0.0, %v409
        %v411 = vpop.f32.mrb[0].mxu0
        %v412 = vadd.f32 0.0, %v411
        %413 = vmatprep.mubr.bf16.mxu0 0
        %414 = vmatmul.mubr.bf16.gmra.mrb[0].mxu0 %v303
        %v415 = vpop.f32.mrb[0].mxu0
        %v416 = vadd.f32 0.0, %v415
        %v417 = vpop.f32.mrb[0].mxu0
        %v418 = vadd.f32 0.0, %v417
        %v419 = vpop.f32.mrb[0].mxu0
        %v420 = vadd.f32 0.0, %v419
        %v421 = vpop.f32.mrb[0].mxu0
        %v422 = vadd.f32 0.0, %v421
        %423 = vmatprep.mubr.bf16.mxu0 0
        %424 = vmatmul.mubr.bf16.gmra.mrb[0].mxu0 %v306
        %v425 = vpop.f32.mrb[0].mxu0
        %v426 = vadd.f32 0.0, %v425
        %v427 = vpop.f32.mrb[0].mxu0
        %v428 = vadd.f32 0.0, %v427
        %v429 = vpop.f32.mrb[0].mxu0
        %v430 = vadd.f32 0.0, %v429
        %v431 = vpop.f32.mrb[0].mxu0
        %v432 = vadd.f32 0.0, %v431
        %433 = vdwg.mxu0
        %434 = vmatprep.subr.bf16.mxu0 %v319
        %435 = vmatpush1.bf16.msra.mxu0 %v316
        %436 = vmatprep.subr.bf16.mxu0 0
        %437 = vmatpush1.bf16.msra.mxu0 0
        %438 = vmatprep.subr.bf16.mxu0 0
        %439 = vmatpush1.bf16.msra.mxu0 0
        %440 = vmatprep.subr.bf16.mxu0 0
        %441 = vmatpush1.bf16.msra.mxu0 0
        %442 = vmatprep.subr.bf16.mxu0 0
        %443 = vmatpush1.bf16.msra.mxu0 0
        %444 = vmatprep.subr.bf16.mxu0 0
        %445 = vmatpush1.bf16.msra.mxu0 0
        %446 = vmatprep.subr.bf16.mxu0 0
        %447 = vmatpush1.bf16.msra.mxu0 0
        %448 = vmatprep.subr.bf16.mxu0 0
        %449 = vmatpush1.bf16.msra.mxu0 0
        %450 = vmatprep.subr.bf16.mxu0 0
        %451 = vmatpush1.bf16.msra.mxu0 0
        %452 = vmatprep.subr.bf16.mxu0 0
        %453 = vmatpush1.bf16.msra.mxu0 0
        %454 = vmatprep.subr.bf16.mxu0 0
        %455 = vmatpush1.bf16.msra.mxu0 0
        %456 = vmatprep.subr.bf16.mxu0 0
        %457 = vmatpush1.bf16.msra.mxu0 0
        %458 = vmatprep.subr.bf16.mxu0 0
        %459 = vmatpush1.bf16.msra.mxu0 0
        %460 = vmatprep.subr.bf16.mxu0 0
        %461 = vmatpush1.bf16.msra.mxu0 0
        %462 = vmatprep.subr.bf16.mxu0 0
        %463 = vmatpush1.bf16.msra.mxu0 0
        %464 = vmatprep.subr.bf16.mxu0 0
        %465 = vmatpush1.bf16.msra.mxu0 0
        %466 = vmatprep.mubr.bf16.mxu0 0
        %467 = vmatmul.mubr.bf16.gmra.mrb[0].mxu0 %v285
        %v468 = vpop.f32.mrb[0].mxu0
        %v469 = vadd.f32 0.0, %v468
        %v470 = vpop.f32.mrb[0].mxu0
        %v471 = vadd.f32 0.0, %v470
        %v472 = vpop.f32.mrb[0].mxu0
        %v473 = vadd.f32 0.0, %v472
        %v474 = vpop.f32.mrb[0].mxu0
        %v475 = vadd.f32 0.0, %v474
        %476 = vmatprep.mubr.bf16.mxu0 0
        %477 = vmatmul.mubr.bf16.gmra.mrb[0].mxu0 %v288
        %v478 = vpop.f32.mrb[0].mxu0
        %v479 = vadd.f32 0.0, %v478
        %v480 = vpop.f32.mrb[0].mxu0
        %v481 = vadd.f32 0.0, %v480
        %v482 = vpop.f32.mrb[0].mxu0
        %v483 = vadd.f32 0.0, %v482
        %v484 = vpop.f32.mrb[0].mxu0
        %v485 = vadd.f32 0.0, %v484
        %486 = vmatprep.mubr.bf16.mxu0 0
        %487 = vmatmul.mubr.bf16.gmra.mrb[0].mxu0 %v291
        %v488 = vpop.f32.mrb[0].mxu0
        %v489 = vadd.f32 0.0, %v488
        %v490 = vpop.f32.mrb[0].mxu0
        %v491 = vadd.f32 0.0, %v490
        %v492 = vpop.f32.mrb[0].mxu0
        %v493 = vadd.f32 0.0, %v492
        %v494 = vpop.f32.mrb[0].mxu0
        %v495 = vadd.f32 0.0, %v494
        %496 = vmatprep.mubr.bf16.mxu0 0
        %497 = vmatmul.mubr.bf16.gmra.mrb[0].mxu0 %v294
        %v498 = vpop.f32.mrb[0].mxu0
        %v499 = vadd.f32 0.0, %v498
        %v500 = vpop.f32.mrb[0].mxu0
        %v501 = vadd.f32 0.0, %v500
        %v502 = vpop.f32.mrb[0].mxu0
        %v503 = vadd.f32 0.0, %v502
        %v504 = vpop.f32.mrb[0].mxu0
        %v505 = vadd.f32 0.0, %v504
        %506 = vmatprep.mubr.bf16.mxu0 0
        %507 = vmatmul.mubr.bf16.gmra.mrb[0].mxu0 %v297
        %v508 = vpop.f32.mrb[0].mxu0
        %v509 = vadd.f32 0.0, %v508
        %v510 = vpop.f32.mrb[0].mxu0
        %v511 = vadd.f32 0.0, %v510
        %v512 = vpop.f32.mrb[0].mxu0
        %v513 = vadd.f32 0.0, %v512
        %v514 = vpop.f32.mrb[0].mxu0
        %v515 = vadd.f32 0.0, %v514
        %516 = vmatprep.mubr.bf16.mxu0 0
        %517 = vmatmul.mubr.bf16.gmra.mrb[0].mxu0 %v300
        %v518 = vpop.f32.mrb[0].mxu0
        %v519 = vadd.f32 0.0, %v518
        %v520 = vpop.f32.mrb[0].mxu0
        %v521 = vadd.f32 0.0, %v520
        %v522 = vpop.f32.mrb[0].mxu0
        %v523 = vadd.f32 0.0, %v522
        %v524 = vpop.f32.mrb[0].mxu0
        %v525 = vadd.f32 0.0, %v524
        %526 = vmatprep.mubr.bf16.mxu0 0
        %527 = vmatmul.mubr.bf16.gmra.mrb[0].mxu0 %v303
        %v528 = vpop.f32.mrb[0].mxu0
        %v529 = vadd.f32 0.0, %v528
        %v530 = vpop.f32.mrb[0].mxu0
        %v531 = vadd.f32 0.0, %v530
        %v532 = vpop.f32.mrb[0].mxu0
        %v533 = vadd.f32 0.0, %v532
        %v534 = vpop.f32.mrb[0].mxu0
        %v535 = vadd.f32 0.0, %v534
        %536 = vmatprep.mubr.bf16.mxu0 0
        %537 = vmatmul.mubr.bf16.gmra.mrb[0].mxu0 %v306
        %v538 = vpop.f32.mrb[0].mxu0
        %v539 = vadd.f32 0.0, %v538
        %v540 = vpop.f32.mrb[0].mxu0
        %v541 = vadd.f32 0.0, %v540
        %v542 = vpop.f32.mrb[0].mxu0
        %v543 = vadd.f32 0.0, %v542
        %v544 = vpop.f32.mrb[0].mxu0
        %v545 = vadd.f32 0.0, %v544
        %546 = vdwg.mxu0
        %v547 = vmax.f32 %v356, 0.0
        %v548 = vmax.f32 %v358, 0.0
        %v549 = vmax.f32 %v469, 0.0
        %v550 = vmax.f32 %v471, 0.0
        %v551 = vmax.f32 %v360, 0.0
        %v552 = vmax.f32 %v362, 0.0
        %v553 = vmax.f32 %v473, 0.0
        %v554 = vmax.f32 %v475, 0.0
        %v555 = vmax.f32 %v366, 0.0
        %v556 = vmax.f32 %v368, 0.0
        %v557 = vmax.f32 %v479, 0.0
        %v558 = vmax.f32 %v481, 0.0
        %v559 = vmax.f32 %v370, 0.0
        %v560 = vmax.f32 %v372, 0.0
        %v561 = vmax.f32 %v483, 0.0
        %v562 = vmax.f32 %v485, 0.0
        %v563 = vmax.f32 %v376, 0.0
        %v564 = vmax.f32 %v378, 0.0
        %v565 = vmax.f32 %v489, 0.0
        %v566 = vmax.f32 %v491, 0.0
        %v567 = vmax.f32 %v380, 0.0
        %v568 = vmax.f32 %v382, 0.0
        %v569 = vmax.f32 %v493, 0.0
        %v570 = vmax.f32 %v495, 0.0
        %v571 = vmax.f32 %v386, 0.0
        %v572 = vmax.f32 %v388, 0.0
        %v573 = vmax.f32 %v499, 0.0
        %v574 = vmax.f32 %v501, 0.0
        %v575 = vmax.f32 %v390, 0.0
        %v576 = vmax.f32 %v392, 0.0
        %v577 = vmax.f32 %v503, 0.0
        %v578 = vmax.f32 %v505, 0.0
        %v579 = vmax.f32 %v396, 0.0
        %v580 = vmax.f32 %v398, 0.0
        %v581 = vmax.f32 %v509, 0.0
        %v582 = vmax.f32 %v511, 0.0
        %v583 = vmax.f32 %v400, 0.0
        %v584 = vmax.f32 %v402, 0.0
        %v585 = vmax.f32 %v513, 0.0
        %v586 = vmax.f32 %v515, 0.0
        %v587 = vmax.f32 %v406, 0.0
        %v588 = vmax.f32 %v408, 0.0
        %v589 = vmax.f32 %v519, 0.0
        %v590 = vmax.f32 %v521, 0.0
        %v591 = vmax.f32 %v410, 0.0
        %v592 = vmax.f32 %v412, 0.0
        %v593 = vmax.f32 %v523, 0.0
        %v594 = vmax.f32 %v525, 0.0
        %v595 = vmax.f32 %v416, 0.0
        %v596 = vmax.f32 %v418, 0.0
        %v597 = vmax.f32 %v529, 0.0
        %v598 = vmax.f32 %v531, 0.0
        %v599 = vmax.f32 %v420, 0.0
        %v600 = vmax.f32 %v422, 0.0
        %v601 = vmax.f32 %v533, 0.0
        %v602 = vmax.f32 %v535, 0.0
        %v603 = vmax.f32 %v426, 0.0
        %v604 = vmax.f32 %v428, 0.0
        %v605 = vmax.f32 %v539, 0.0
        %v606 = vmax.f32 %v541, 0.0
        %v607 = vmax.f32 %v430, 0.0
        %v608 = vmax.f32 %v432, 0.0
        %v609 = vmax.f32 %v543, 0.0
        %v610 = vmax.f32 %v545, 0.0
        %v611 = vpack.c.bf16 %v551, %v547
        %v612 = vpack.c.bf16 %v552, %v548
        %v613 = vpack.c.bf16 %v553, %v549
        %v614 = vpack.c.bf16 %v554, %v550
        %v615 = vpack.c.bf16 %v559, %v555
        %v616 = vpack.c.bf16 %v560, %v556
        %v617 = vpack.c.bf16 %v561, %v557
        %v618 = vpack.c.bf16 %v562, %v558
        %v619 = vpack.c.bf16 %v567, %v563
        %v620 = vpack.c.bf16 %v568, %v564
        %v621 = vpack.c.bf16 %v569, %v565
        %v622 = vpack.c.bf16 %v570, %v566
        %v623 = vpack.c.bf16 %v575, %v571
        %v624 = vpack.c.bf16 %v576, %v572
        %v625 = vpack.c.bf16 %v577, %v573
        %v626 = vpack.c.bf16 %v578, %v574
        %v627 = vpack.c.bf16 %v583, %v579
        %v628 = vpack.c.bf16 %v584, %v580
        %v629 = vpack.c.bf16 %v585, %v581
        %v630 = vpack.c.bf16 %v586, %v582
        %v631 = vpack.c.bf16 %v591, %v587
        %v632 = vpack.c.bf16 %v592, %v588
        %v633 = vpack.c.bf16 %v593, %v589
        %v634 = vpack.c.bf16 %v594, %v590
        %v635 = vpack.c.bf16 %v599, %v595
        %v636 = vpack.c.bf16 %v600, %v596
        %v637 = vpack.c.bf16 %v601, %v597
        %v638 = vpack.c.bf16 %v602, %v598
        %v639 = vpack.c.bf16 %v607, %v603
        %v640 = vpack.c.bf16 %v608, %v604
        %v641 = vpack.c.bf16 %v609, %v605
        %v642 = vpack.c.bf16 %v610, %v606
        %v643 = vld [vmem:[#allocation2] sm:$0xff]
        %v644 = vld [vmem:[#allocation2 + $0x8] sm:$0xff]
        %v645 = vld [vmem:[#allocation2 + $0x10] sm:$0xff]
        %v646 = vld [vmem:[#allocation2 + $0x18] sm:$0xff]
        %v647 = vld [vmem:[#allocation2 + $0x20] sm:$0xff]
        %v648 = vld [vmem:[#allocation2 + $0x28] sm:$0xff]
        %v649 = vld [vmem:[#allocation2 + $0x30] sm:$0xff]
        %v650 = vld [vmem:[#allocation2 + $0x38] sm:$0xff]
        %v651 = vld [vmem:[#allocation2 + $0x40] sm:$0xff]
        %v652 = vld [vmem:[#allocation2 + $0x48] sm:$0xff]
        %v653 = vld [vmem:[#allocation2 + $0x50] sm:$0xff]
        %v654 = vld [vmem:[#allocation2 + $0x58] sm:$0xff]
        %v655 = vld [vmem:[#allocation2 + $0x60] sm:$0xff]
        %v656 = vld [vmem:[#allocation2 + $0x68] sm:$0xff]
        %v657 = vld [vmem:[#allocation2 + $0x70] sm:$0xff]
        %v658 = vld [vmem:[#allocation2 + $0x78] sm:$0xff]
        %v659 = vld [vmem:[#allocation2 + $0x80] sm:$0xff]
        %v660 = vld [vmem:[#allocation2 + $0x88] sm:$0xff]
        %v661 = vld [vmem:[#allocation2 + $0x90] sm:$0xff]
        %v662 = vld [vmem:[#allocation2 + $0x98] sm:$0xff]
        %v663 = vld [vmem:[#allocation2 + $0xa0] sm:$0xff]
        %v664 = vld [vmem:[#allocation2 + $0xa8] sm:$0xff]
        %v665 = vld [vmem:[#allocation2 + $0xb0] sm:$0xff]
        %v666 = vld [vmem:[#allocation2 + $0xb8] sm:$0xff]
        %v667 = vld [vmem:[#allocation2 + $0xc0] sm:$0xff]
        %v668 = vld [vmem:[#allocation2 + $0xc8] sm:$0xff]
        %v669 = vld [vmem:[#allocation2 + $0xd0] sm:$0xff]
        %v670 = vld [vmem:[#allocation2 + $0xd8] sm:$0xff]
        %v671 = vld [vmem:[#allocation2 + $0xe0] sm:$0xff]
        %v672 = vld [vmem:[#allocation2 + $0xe8] sm:$0xff]
        %v673 = vld [vmem:[#allocation2 + $0xf0] sm:$0xff]
        %v674 = vld [vmem:[#allocation2 + $0xf8] sm:$0xff]
        %v675 = vld [vmem:[#allocation2 + $0x100] sm:$0xff]
        %v676 = vld [vmem:[#allocation2 + $0x108] sm:$0xff]
        %v677 = vld [vmem:[#allocation2 + $0x110] sm:$0xff]
        %v678 = vld [vmem:[#allocation2 + $0x118] sm:$0xff]
        %v679 = vld [vmem:[#allocation2 + $0x120] sm:$0xff]
        %v680 = vld [vmem:[#allocation2 + $0x128] sm:$0xff]
        %v681 = vld [vmem:[#allocation2 + $0x130] sm:$0xff]
        %v682 = vld [vmem:[#allocation2 + $0x138] sm:$0xff]
        %v683 = vld [vmem:[#allocation2 + $0x140] sm:$0xff]
        %v684 = vld [vmem:[#allocation2 + $0x148] sm:$0xff]
        %v685 = vld [vmem:[#allocation2 + $0x150] sm:$0xff]
        %v686 = vld [vmem:[#allocation2 + $0x158] sm:$0xff]
        %v687 = vld [vmem:[#allocation2 + $0x160] sm:$0xff]
        %v688 = vld [vmem:[#allocation2 + $0x168] sm:$0xff]
        %v689 = vld [vmem:[#allocation2 + $0x170] sm:$0xff]
        %v690 = vld [vmem:[#allocation2 + $0x178] sm:$0xff]
        %v691 = vld [vmem:[#allocation2 + $0x180] sm:$0xff]
        %v692 = vld [vmem:[#allocation2 + $0x188] sm:$0xff]
        %v693 = vld [vmem:[#allocation2 + $0x190] sm:$0xff]
        %v694 = vld [vmem:[#allocation2 + $0x198] sm:$0xff]
        %v695 = vld [vmem:[#allocation2 + $0x1a0] sm:$0xff]
        %v696 = vld [vmem:[#allocation2 + $0x1a8] sm:$0xff]
        %v697 = vld [vmem:[#allocation2 + $0x1b0] sm:$0xff]
        %v698 = vld [vmem:[#allocation2 + $0x1b8] sm:$0xff]
        %v699 = vld [vmem:[#allocation2 + $0x1c0] sm:$0xff]
        %v700 = vld [vmem:[#allocation2 + $0x1c8] sm:$0xff]
        %v701 = vld [vmem:[#allocation2 + $0x1d0] sm:$0xff]
        %v702 = vld [vmem:[#allocation2 + $0x1d8] sm:$0xff]
        %v703 = vld [vmem:[#allocation2 + $0x1e0] sm:$0xff]
        %v704 = vld [vmem:[#allocation2 + $0x1e8] sm:$0xff]
        %v705 = vld [vmem:[#allocation2 + $0x1f0] sm:$0xff]
        %v706 = vld [vmem:[#allocation2 + $0x1f8] sm:$0xff]
        %v771 = vunpack.c.l.b16 %v643
        %v772 = vunpack.c.h.b16 %v643
        %v773 = vunpack.c.l.b16 %v644
        %v774 = vunpack.c.h.b16 %v644
        %v775 = vunpack.c.l.b16 %v645
        %v776 = vunpack.c.h.b16 %v645
        %v777 = vunpack.c.l.b16 %v646
        %v778 = vunpack.c.h.b16 %v646
        %v779 = vunpack.c.l.b16 %v647
        %v780 = vunpack.c.h.b16 %v647
        %v781 = vunpack.c.l.b16 %v648
        %v782 = vunpack.c.h.b16 %v648
        %v783 = vunpack.c.l.b16 %v649
        %v784 = vunpack.c.h.b16 %v649
        %v785 = vunpack.c.l.b16 %v650
        %v786 = vunpack.c.h.b16 %v650
        %v787 = vunpack.c.l.b16 %v651
        %v788 = vunpack.c.h.b16 %v651
        %v789 = vunpack.c.l.b16 %v652
        %v790 = vunpack.c.h.b16 %v652
        %v791 = vunpack.c.l.b16 %v653
        %v792 = vunpack.c.h.b16 %v653
        %v793 = vunpack.c.l.b16 %v654
        %v794 = vunpack.c.h.b16 %v654
        %v795 = vunpack.c.l.b16 %v655
        %v796 = vunpack.c.h.b16 %v655
        %v797 = vunpack.c.l.b16 %v656
        %v798 = vunpack.c.h.b16 %v656
        %v799 = vunpack.c.l.b16 %v657
        %v800 = vunpack.c.h.b16 %v657
        %v801 = vunpack.c.l.b16 %v658
        %v802 = vunpack.c.h.b16 %v658
        %v803 = vunpack.c.l.b16 %v659
        %v804 = vunpack.c.h.b16 %v659
        %v805 = vunpack.c.l.b16 %v660
        %v806 = vunpack.c.h.b16 %v660
        %v807 = vunpack.c.l.b16 %v661
        %v808 = vunpack.c.h.b16 %v661
        %v809 = vunpack.c.l.b16 %v662
        %v810 = vunpack.c.h.b16 %v662
        %v811 = vunpack.c.l.b16 %v663
        %v812 = vunpack.c.h.b16 %v663
        %v813 = vunpack.c.l.b16 %v664
        %v814 = vunpack.c.h.b16 %v664
        %v815 = vunpack.c.l.b16 %v665
        %v816 = vunpack.c.h.b16 %v665
        %v817 = vunpack.c.l.b16 %v666
        %v818 = vunpack.c.h.b16 %v666
        %v819 = vunpack.c.l.b16 %v667
        %v820 = vunpack.c.h.b16 %v667
        %v821 = vunpack.c.l.b16 %v668
        %v822 = vunpack.c.h.b16 %v668
        %v823 = vunpack.c.l.b16 %v669
        %v824 = vunpack.c.h.b16 %v669
        %v825 = vunpack.c.l.b16 %v670
        %v826 = vunpack.c.h.b16 %v670
        %v827 = vunpack.c.l.b16 %v671
        %v828 = vunpack.c.h.b16 %v671
        %v829 = vunpack.c.l.b16 %v672
        %v830 = vunpack.c.h.b16 %v672
        %v831 = vunpack.c.l.b16 %v673
        %v832 = vunpack.c.h.b16 %v673
        %v833 = vunpack.c.l.b16 %v674
        %v834 = vunpack.c.h.b16 %v674
        %v835 = vunpack.c.l.b16 %v675
        %v836 = vunpack.c.h.b16 %v675
        %v837 = vunpack.c.l.b16 %v676
        %v838 = vunpack.c.h.b16 %v676
        %v839 = vunpack.c.l.b16 %v677
        %v840 = vunpack.c.h.b16 %v677
        %v841 = vunpack.c.l.b16 %v678
        %v842 = vunpack.c.h.b16 %v678
        %v843 = vunpack.c.l.b16 %v679
        %v844 = vunpack.c.h.b16 %v679
        %v845 = vunpack.c.l.b16 %v680
        %v846 = vunpack.c.h.b16 %v680
        %v847 = vunpack.c.l.b16 %v681
        %v848 = vunpack.c.h.b16 %v681
        %v849 = vunpack.c.l.b16 %v682
        %v850 = vunpack.c.h.b16 %v682
        %v851 = vunpack.c.l.b16 %v683
        %v852 = vunpack.c.h.b16 %v683
        %v853 = vunpack.c.l.b16 %v684
        %v854 = vunpack.c.h.b16 %v684
        %v855 = vunpack.c.l.b16 %v685
        %v856 = vunpack.c.h.b16 %v685
        %v857 = vunpack.c.l.b16 %v686
        %v858 = vunpack.c.h.b16 %v686
        %v859 = vunpack.c.l.b16 %v687
        %v860 = vunpack.c.h.b16 %v687
        %v861 = vunpack.c.l.b16 %v688
        %v862 = vunpack.c.h.b16 %v688
        %v863 = vunpack.c.l.b16 %v689
        %v864 = vunpack.c.h.b16 %v689
        %v865 = vunpack.c.l.b16 %v690
        %v866 = vunpack.c.h.b16 %v690
        %v867 = vunpack.c.l.b16 %v691
        %v868 = vunpack.c.h.b16 %v691
        %v869 = vunpack.c.l.b16 %v692
        %v870 = vunpack.c.h.b16 %v692
        %v871 = vunpack.c.l.b16 %v693
        %v872 = vunpack.c.h.b16 %v693
        %v873 = vunpack.c.l.b16 %v694
        %v874 = vunpack.c.h.b16 %v694
        %v875 = vunpack.c.l.b16 %v695
        %v876 = vunpack.c.h.b16 %v695
        %v877 = vunpack.c.l.b16 %v696
        %v878 = vunpack.c.h.b16 %v696
        %v879 = vunpack.c.l.b16 %v697
        %v880 = vunpack.c.h.b16 %v697
        %v881 = vunpack.c.l.b16 %v698
        %v882 = vunpack.c.h.b16 %v698
        %v883 = vunpack.c.l.b16 %v699
        %v884 = vunpack.c.h.b16 %v699
        %v885 = vunpack.c.l.b16 %v700
        %v886 = vunpack.c.h.b16 %v700
        %v887 = vunpack.c.l.b16 %v701
        %v888 = vunpack.c.h.b16 %v701
        %v889 = vunpack.c.l.b16 %v702
        %v890 = vunpack.c.h.b16 %v702
        %v891 = vunpack.c.l.b16 %v703
        %v892 = vunpack.c.h.b16 %v703
        %v893 = vunpack.c.l.b16 %v704
        %v894 = vunpack.c.h.b16 %v704
        %v895 = vunpack.c.l.b16 %v705
        %v896 = vunpack.c.h.b16 %v705
        %v897 = vunpack.c.l.b16 %v706
        %v898 = vunpack.c.h.b16 %v706
        %v899 = vpack.c.b16 %v773, %v771
        %v900 = vpack.c.b16 %v774, %v772
        %v901 = vpack.c.b16 %v777, %v775
        %v902 = vpack.c.b16 %v778, %v776
        %v903 = vpack.c.b16 %v781, %v779
        %v904 = vpack.c.b16 %v782, %v780
        %v905 = vpack.c.b16 %v785, %v783
        %v906 = vpack.c.b16 %v786, %v784
        %v907 = vpack.c.b16 %v789, %v787
        %v908 = vpack.c.b16 %v790, %v788
        %v909 = vpack.c.b16 %v793, %v791
        %v910 = vpack.c.b16 %v794, %v792
        %v911 = vpack.c.b16 %v797, %v795
        %v912 = vpack.c.b16 %v798, %v796
        %v913 = vpack.c.b16 %v801, %v799
        %v914 = vpack.c.b16 %v802, %v800
        %v915 = vpack.c.b16 %v805, %v803
        %v916 = vpack.c.b16 %v806, %v804
        %v917 = vpack.c.b16 %v809, %v807
        %v918 = vpack.c.b16 %v810, %v808
        %v919 = vpack.c.b16 %v813, %v811
        %v920 = vpack.c.b16 %v814, %v812
        %v921 = vpack.c.b16 %v817, %v815
        %v922 = vpack.c.b16 %v818, %v816
        %v923 = vpack.c.b16 %v821, %v819
        %v924 = vpack.c.b16 %v822, %v820
        %v925 = vpack.c.b16 %v825, %v823
        %v926 = vpack.c.b16 %v826, %v824
        %v927 = vpack.c.b16 %v829, %v827
        %v928 = vpack.c.b16 %v830, %v828
        %v929 = vpack.c.b16 %v833, %v831
        %v930 = vpack.c.b16 %v834, %v832
        %v931 = vpack.c.b16 %v837, %v835
        %v932 = vpack.c.b16 %v838, %v836
        %v933 = vpack.c.b16 %v841, %v839
        %v934 = vpack.c.b16 %v842, %v840
        %v935 = vpack.c.b16 %v845, %v843
        %v936 = vpack.c.b16 %v846, %v844
        %v937 = vpack.c.b16 %v849, %v847
        %v938 = vpack.c.b16 %v850, %v848
        %v939 = vpack.c.b16 %v853, %v851
        %v940 = vpack.c.b16 %v854, %v852
        %v941 = vpack.c.b16 %v857, %v855
        %v942 = vpack.c.b16 %v858, %v856
        %v943 = vpack.c.b16 %v861, %v859
        %v944 = vpack.c.b16 %v862, %v860
        %v945 = vpack.c.b16 %v865, %v863
        %v946 = vpack.c.b16 %v866, %v864
        %v947 = vpack.c.b16 %v869, %v867
        %v948 = vpack.c.b16 %v870, %v868
        %v949 = vpack.c.b16 %v873, %v871
        %v950 = vpack.c.b16 %v874, %v872
        %v951 = vpack.c.b16 %v877, %v875
        %v952 = vpack.c.b16 %v878, %v876
        %v953 = vpack.c.b16 %v881, %v879
        %v954 = vpack.c.b16 %v882, %v880
        %v955 = vpack.c.b16 %v885, %v883
        %v956 = vpack.c.b16 %v886, %v884
        %v957 = vpack.c.b16 %v889, %v887
        %v958 = vpack.c.b16 %v890, %v888
        %v959 = vpack.c.b16 %v893, %v891
        %v960 = vpack.c.b16 %v894, %v892
        %v961 = vpack.c.b16 %v897, %v895
        %v962 = vpack.c.b16 %v898, %v896
        %1027 = vmatprep.subr.bf16.mxu0 %v900
        %1028 = vmatpush1.bf16.msra.mxu0 %v899
        %1029 = vmatprep.subr.bf16.mxu0 %v902
        %1030 = vmatpush1.bf16.msra.mxu0 %v901
        %1031 = vmatprep.subr.bf16.mxu0 %v904
        %1032 = vmatpush1.bf16.msra.mxu0 %v903
        %1033 = vmatprep.subr.bf16.mxu0 %v906
        %1034 = vmatpush1.bf16.msra.mxu0 %v905
        %1035 = vmatprep.subr.bf16.mxu0 %v908
        %1036 = vmatpush1.bf16.msra.mxu0 %v907
        %1037 = vmatprep.subr.bf16.mxu0 %v910
        %1038 = vmatpush1.bf16.msra.mxu0 %v909
        %1039 = vmatprep.subr.bf16.mxu0 %v912
        %1040 = vmatpush1.bf16.msra.mxu0 %v911
        %1041 = vmatprep.subr.bf16.mxu0 %v914
        %1042 = vmatpush1.bf16.msra.mxu0 %v913
        %1043 = vmatprep.subr.bf16.mxu0 %v916
        %1044 = vmatpush1.bf16.msra.mxu0 %v915
        %1045 = vmatprep.subr.bf16.mxu0 %v918
        %1046 = vmatpush1.bf16.msra.mxu0 %v917
        %1047 = vmatprep.subr.bf16.mxu0 %v920
        %1048 = vmatpush1.bf16.msra.mxu0 %v919
        %1049 = vmatprep.subr.bf16.mxu0 %v922
        %1050 = vmatpush1.bf16.msra.mxu0 %v921
        %1051 = vmatprep.subr.bf16.mxu0 %v924
        %1052 = vmatpush1.bf16.msra.mxu0 %v923
        %1053 = vmatprep.subr.bf16.mxu0 %v926
        %1054 = vmatpush1.bf16.msra.mxu0 %v925
        %1055 = vmatprep.subr.bf16.mxu0 %v928
        %1056 = vmatpush1.bf16.msra.mxu0 %v927
        %1057 = vmatprep.subr.bf16.mxu0 %v930
        %1058 = vmatpush1.bf16.msra.mxu0 %v929
        %1059 = vmatprep.mubr.bf16.mxu0 %v612
        %1060 = vmatmul.mubr.bf16.gmra.mrb[0].mxu0 %v611
        %v1061 = vpop.f32.mrb[0].mxu0
        %v1062 = vadd.f32 0.0, %v1061
        %v1063 = vpop.f32.mrb[0].mxu0
        %v1064 = vadd.f32 0.0, %v1063
        %v1065 = vpop.f32.mrb[0].mxu0
        %v1066 = vadd.f32 0.0, %v1065
        %v1067 = vpop.f32.mrb[0].mxu0
        %v1068 = vadd.f32 0.0, %v1067
        %1069 = vmatprep.mubr.bf16.mxu0 %v616
        %1070 = vmatmul.mubr.bf16.gmra.mrb[0].mxu0 %v615
        %v1071 = vpop.f32.mrb[0].mxu0
        %v1072 = vadd.f32 0.0, %v1071
        %v1073 = vpop.f32.mrb[0].mxu0
        %v1074 = vadd.f32 0.0, %v1073
        %v1075 = vpop.f32.mrb[0].mxu0
        %v1076 = vadd.f32 0.0, %v1075
        %v1077 = vpop.f32.mrb[0].mxu0
        %v1078 = vadd.f32 0.0, %v1077
        %1079 = vmatprep.mubr.bf16.mxu0 %v620
        %1080 = vmatmul.mubr.bf16.gmra.mrb[0].mxu0 %v619
        %v1081 = vpop.f32.mrb[0].mxu0
        %v1082 = vadd.f32 0.0, %v1081
        %v1083 = vpop.f32.mrb[0].mxu0
        %v1084 = vadd.f32 0.0, %v1083
        %v1085 = vpop.f32.mrb[0].mxu0
        %v1086 = vadd.f32 0.0, %v1085
        %v1087 = vpop.f32.mrb[0].mxu0
        %v1088 = vadd.f32 0.0, %v1087
        %1089 = vmatprep.mubr.bf16.mxu0 %v624
        %1090 = vmatmul.mubr.bf16.gmra.mrb[0].mxu0 %v623
        %v1091 = vpop.f32.mrb[0].mxu0
        %v1092 = vadd.f32 0.0, %v1091
        %v1093 = vpop.f32.mrb[0].mxu0
        %v1094 = vadd.f32 0.0, %v1093
        %v1095 = vpop.f32.mrb[0].mxu0
        %v1096 = vadd.f32 0.0, %v1095
        %v1097 = vpop.f32.mrb[0].mxu0
        %v1098 = vadd.f32 0.0, %v1097
        %1099 = vmatprep.mubr.bf16.mxu0 %v628
        %1100 = vmatmul.mubr.bf16.gmra.mrb[0].mxu0 %v627
        %v1101 = vpop.f32.mrb[0].mxu0
        %v1102 = vadd.f32 0.0, %v1101
        %v1103 = vpop.f32.mrb[0].mxu0
        %v1104 = vadd.f32 0.0, %v1103
        %v1105 = vpop.f32.mrb[0].mxu0
        %v1106 = vadd.f32 0.0, %v1105
        %v1107 = vpop.f32.mrb[0].mxu0
        %v1108 = vadd.f32 0.0, %v1107
        %1109 = vmatprep.mubr.bf16.mxu0 %v632
        %1110 = vmatmul.mubr.bf16.gmra.mrb[0].mxu0 %v631
        %v1111 = vpop.f32.mrb[0].mxu0
        %v1112 = vadd.f32 0.0, %v1111
        %v1113 = vpop.f32.mrb[0].mxu0
        %v1114 = vadd.f32 0.0, %v1113
        %v1115 = vpop.f32.mrb[0].mxu0
        %v1116 = vadd.f32 0.0, %v1115
        %v1117 = vpop.f32.mrb[0].mxu0
        %v1118 = vadd.f32 0.0, %v1117
        %1119 = vmatprep.mubr.bf16.mxu0 %v636
        %1120 = vmatmul.mubr.bf16.gmra.mrb[0].mxu0 %v635
        %v1121 = vpop.f32.mrb[0].mxu0
        %v1122 = vadd.f32 0.0, %v1121
        %v1123 = vpop.f32.mrb[0].mxu0
        %v1124 = vadd.f32 0.0, %v1123
        %v1125 = vpop.f32.mrb[0].mxu0
        %v1126 = vadd.f32 0.0, %v1125
        %v1127 = vpop.f32.mrb[0].mxu0
        %v1128 = vadd.f32 0.0, %v1127
        %1129 = vmatprep.mubr.bf16.mxu0 %v640
        %1130 = vmatmul.mubr.bf16.gmra.mrb[0].mxu0 %v639
        %v1131 = vpop.f32.mrb[0].mxu0
        %v1132 = vadd.f32 0.0, %v1131
        %v1133 = vpop.f32.mrb[0].mxu0
        %v1134 = vadd.f32 0.0, %v1133
        %v1135 = vpop.f32.mrb[0].mxu0
        %v1136 = vadd.f32 0.0, %v1135
        %v1137 = vpop.f32.mrb[0].mxu0
        %v1138 = vadd.f32 0.0, %v1137
        %1139 = vdwg.mxu0
        %1140 = vmatprep.subr.bf16.mxu0 %v932
        %1141 = vmatpush1.bf16.msra.mxu0 %v931
        %1142 = vmatprep.subr.bf16.mxu0 %v934
        %1143 = vmatpush1.bf16.msra.mxu0 %v933
        %1144 = vmatprep.subr.bf16.mxu0 %v936
        %1145 = vmatpush1.bf16.msra.mxu0 %v935
        %1146 = vmatprep.subr.bf16.mxu0 %v938
        %1147 = vmatpush1.bf16.msra.mxu0 %v937
        %1148 = vmatprep.subr.bf16.mxu0 %v940
        %1149 = vmatpush1.bf16.msra.mxu0 %v939
        %1150 = vmatprep.subr.bf16.mxu0 %v942
        %1151 = vmatpush1.bf16.msra.mxu0 %v941
        %1152 = vmatprep.subr.bf16.mxu0 %v944
        %1153 = vmatpush1.bf16.msra.mxu0 %v943
        %1154 = vmatprep.subr.bf16.mxu0 %v946
        %1155 = vmatpush1.bf16.msra.mxu0 %v945
        %1156 = vmatprep.subr.bf16.mxu0 %v948
        %1157 = vmatpush1.bf16.msra.mxu0 %v947
        %1158 = vmatprep.subr.bf16.mxu0 %v950
        %1159 = vmatpush1.bf16.msra.mxu0 %v949
        %1160 = vmatprep.subr.bf16.mxu0 %v952
        %1161 = vmatpush1.bf16.msra.mxu0 %v951
        %1162 = vmatprep.subr.bf16.mxu0 %v954
        %1163 = vmatpush1.bf16.msra.mxu0 %v953
        %1164 = vmatprep.subr.bf16.mxu0 %v956
        %1165 = vmatpush1.bf16.msra.mxu0 %v955
        %1166 = vmatprep.subr.bf16.mxu0 %v958
        %1167 = vmatpush1.bf16.msra.mxu0 %v957
        %1168 = vmatprep.subr.bf16.mxu0 %v960
        %1169 = vmatpush1.bf16.msra.mxu0 %v959
        %1170 = vmatprep.subr.bf16.mxu0 %v962
        %1171 = vmatpush1.bf16.msra.mxu0 %v961
        %1172 = vmatprep.mubr.bf16.mxu0 %v614
        %1173 = vmatmul.mubr.bf16.gmra.mrb[0].mxu0 %v613
        %v1174 = vpop.f32.mrb[0].mxu0
        %v1175 = vadd.f32 %v1062, %v1174
        %v1176 = vpop.f32.mrb[0].mxu0
        %v1177 = vadd.f32 %v1064, %v1176
        %v1178 = vpop.f32.mrb[0].mxu0
        %v1179 = vadd.f32 %v1066, %v1178
        %v1180 = vpop.f32.mrb[0].mxu0
        %v1181 = vadd.f32 %v1068, %v1180
        %1182 = vmatprep.mubr.bf16.mxu0 %v618
        %1183 = vmatmul.mubr.bf16.gmra.mrb[0].mxu0 %v617
        %v1184 = vpop.f32.mrb[0].mxu0
        %v1185 = vadd.f32 %v1072, %v1184
        %v1186 = vpop.f32.mrb[0].mxu0
        %v1187 = vadd.f32 %v1074, %v1186
        %v1188 = vpop.f32.mrb[0].mxu0
        %v1189 = vadd.f32 %v1076, %v1188
        %v1190 = vpop.f32.mrb[0].mxu0
        %v1191 = vadd.f32 %v1078, %v1190
        %1192 = vmatprep.mubr.bf16.mxu0 %v622
        %1193 = vmatmul.mubr.bf16.gmra.mrb[0].mxu0 %v621
        %v1194 = vpop.f32.mrb[0].mxu0
        %v1195 = vadd.f32 %v1082, %v1194
        %v1196 = vpop.f32.mrb[0].mxu0
        %v1197 = vadd.f32 %v1084, %v1196
        %v1198 = vpop.f32.mrb[0].mxu0
        %v1199 = vadd.f32 %v1086, %v1198
        %v1200 = vpop.f32.mrb[0].mxu0
        %v1201 = vadd.f32 %v1088, %v1200
        %1202 = vmatprep.mubr.bf16.mxu0 %v626
        %1203 = vmatmul.mubr.bf16.gmra.mrb[0].mxu0 %v625
        %v1204 = vpop.f32.mrb[0].mxu0
        %v1205 = vadd.f32 %v1092, %v1204
        %v1206 = vpop.f32.mrb[0].mxu0
        %v1207 = vadd.f32 %v1094, %v1206
        %v1208 = vpop.f32.mrb[0].mxu0
        %v1209 = vadd.f32 %v1096, %v1208
        %v1210 = vpop.f32.mrb[0].mxu0
        %v1211 = vadd.f32 %v1098, %v1210
        %1212 = vmatprep.mubr.bf16.mxu0 %v630
        %1213 = vmatmul.mubr.bf16.gmra.mrb[0].mxu0 %v629
        %v1214 = vpop.f32.mrb[0].mxu0
        %v1215 = vadd.f32 %v1102, %v1214
        %v1216 = vpop.f32.mrb[0].mxu0
        %v1217 = vadd.f32 %v1104, %v1216
        %v1218 = vpop.f32.mrb[0].mxu0
        %v1219 = vadd.f32 %v1106, %v1218
        %v1220 = vpop.f32.mrb[0].mxu0
        %v1221 = vadd.f32 %v1108, %v1220
        %1222 = vmatprep.mubr.bf16.mxu0 %v634
        %1223 = vmatmul.mubr.bf16.gmra.mrb[0].mxu0 %v633
        %v1224 = vpop.f32.mrb[0].mxu0
        %v1225 = vadd.f32 %v1112, %v1224
        %v1226 = vpop.f32.mrb[0].mxu0
        %v1227 = vadd.f32 %v1114, %v1226
        %v1228 = vpop.f32.mrb[0].mxu0
        %v1229 = vadd.f32 %v1116, %v1228
        %v1230 = vpop.f32.mrb[0].mxu0
        %v1231 = vadd.f32 %v1118, %v1230
        %1232 = vmatprep.mubr.bf16.mxu0 %v638
        %1233 = vmatmul.mubr.bf16.gmra.mrb[0].mxu0 %v637
        %v1234 = vpop.f32.mrb[0].mxu0
        %v1235 = vadd.f32 %v1122, %v1234
        %v1236 = vpop.f32.mrb[0].mxu0
        %v1237 = vadd.f32 %v1124, %v1236
        %v1238 = vpop.f32.mrb[0].mxu0
        %v1239 = vadd.f32 %v1126, %v1238
        %v1240 = vpop.f32.mrb[0].mxu0
        %v1241 = vadd.f32 %v1128, %v1240
        %1242 = vmatprep.mubr.bf16.mxu0 %v642
        %1243 = vmatmul.mubr.bf16.gmra.mrb[0].mxu0 %v641
        %v1244 = vpop.f32.mrb[0].mxu0
        %v1245 = vadd.f32 %v1132, %v1244
        %v1246 = vpop.f32.mrb[0].mxu0
        %v1247 = vadd.f32 %v1134, %v1246
        %v1248 = vpop.f32.mrb[0].mxu0
        %v1249 = vadd.f32 %v1136, %v1248
        %v1250 = vpop.f32.mrb[0].mxu0
        %v1251 = vadd.f32 %v1138, %v1250
        %1252 = vdwg.mxu0
        %v1253 = vmax.f32 %v1175, 0.0
        %v1254 = vmax.f32 %v1177, 0.0
        %v1255 = vmax.f32 %v1179, 0.0
        %v1256 = vmax.f32 %v1181, 0.0
        %v1257 = vmax.f32 %v1185, 0.0
        %v1258 = vmax.f32 %v1187, 0.0
        %v1259 = vmax.f32 %v1189, 0.0
        %v1260 = vmax.f32 %v1191, 0.0
        %v1261 = vmax.f32 %v1195, 0.0
        %v1262 = vmax.f32 %v1197, 0.0
        %v1263 = vmax.f32 %v1199, 0.0
        %v1264 = vmax.f32 %v1201, 0.0
        %v1265 = vmax.f32 %v1205, 0.0
        %v1266 = vmax.f32 %v1207, 0.0
        %v1267 = vmax.f32 %v1209, 0.0
        %v1268 = vmax.f32 %v1211, 0.0
        %v1269 = vmax.f32 %v1215, 0.0
        %v1270 = vmax.f32 %v1217, 0.0
        %v1271 = vmax.f32 %v1219, 0.0
        %v1272 = vmax.f32 %v1221, 0.0
        %v1273 = vmax.f32 %v1225, 0.0
        %v1274 = vmax.f32 %v1227, 0.0
        %v1275 = vmax.f32 %v1229, 0.0
        %v1276 = vmax.f32 %v1231, 0.0
        %v1277 = vmax.f32 %v1235, 0.0
        %v1278 = vmax.f32 %v1237, 0.0
        %v1279 = vmax.f32 %v1239, 0.0
        %v1280 = vmax.f32 %v1241, 0.0
        %v1281 = vmax.f32 %v1245, 0.0
        %v1282 = vmax.f32 %v1247, 0.0
        %v1283 = vmax.f32 %v1249, 0.0
        %v1284 = vmax.f32 %v1251, 0.0
        %v1285 = vpack.c.bf16 %v1255, %v1253
        %v1286 = vpack.c.bf16 %v1256, %v1254
        %v1287 = vpack.c.bf16 %v1259, %v1257
        %v1288 = vpack.c.bf16 %v1260, %v1258
        %v1289 = vpack.c.bf16 %v1263, %v1261
        %v1290 = vpack.c.bf16 %v1264, %v1262
        %v1291 = vpack.c.bf16 %v1267, %v1265
        %v1292 = vpack.c.bf16 %v1268, %v1266
        %v1293 = vpack.c.bf16 %v1271, %v1269
        %v1294 = vpack.c.bf16 %v1272, %v1270
        %v1295 = vpack.c.bf16 %v1275, %v1273
        %v1296 = vpack.c.bf16 %v1276, %v1274
        %v1297 = vpack.c.bf16 %v1279, %v1277
        %v1298 = vpack.c.bf16 %v1280, %v1278
        %v1299 = vpack.c.bf16 %v1283, %v1281
        %v1300 = vpack.c.bf16 %v1284, %v1282
        %v1301 = vld [vmem:[%s3] sm:$0xf]
        %v1302 = vld [vmem:[%s3 + $0x4] sm:$0xf]
        %v1303 = vld [vmem:[%s3 + $0x8] sm:$0xf]
        %v1304 = vld [vmem:[%s3 + $0xc] sm:$0xf]
        %v1305 = vld [vmem:[%s3 + $0x10] sm:$0xf]
        %v1306 = vld [vmem:[%s3 + $0x14] sm:$0xf]
        %v1307 = vld [vmem:[%s3 + $0x18] sm:$0xf]
        %v1308 = vld [vmem:[%s3 + $0x1c] sm:$0xf]
        %v1309 = vld [vmem:[%s3 + $0x20] sm:$0xf]
        %v1310 = vld [vmem:[%s3 + $0x24] sm:$0xf]
        %v1311 = vld [vmem:[%s3 + $0x28] sm:$0xf]
        %v1312 = vld [vmem:[%s3 + $0x2c] sm:$0xf]
        %v1313 = vld [vmem:[%s3 + $0x30] sm:$0xf]
        %v1314 = vld [vmem:[%s3 + $0x34] sm:$0xf]
        %v1315 = vld [vmem:[%s3 + $0x38] sm:$0xf]
        %v1316 = vld [vmem:[%s3 + $0x3c] sm:$0xf]
        %v1317 = vld [vmem:[%s3 + $0x40] sm:$0xf]
        %v1318 = vld [vmem:[%s3 + $0x44] sm:$0xf]
        %v1319 = vld [vmem:[%s3 + $0x48] sm:$0xf]
        %v1320 = vld [vmem:[%s3 + $0x4c] sm:$0xf]
        %v1321 = vld [vmem:[%s3 + $0x50] sm:$0xf]
        %v1322 = vld [vmem:[%s3 + $0x54] sm:$0xf]
        %v1323 = vld [vmem:[%s3 + $0x58] sm:$0xf]
        %v1324 = vld [vmem:[%s3 + $0x5c] sm:$0xf]
        %v1325 = vld [vmem:[%s3 + $0x60] sm:$0xf]
        %v1326 = vld [vmem:[%s3 + $0x64] sm:$0xf]
        %v1327 = vld [vmem:[%s3 + $0x68] sm:$0xf]
        %v1328 = vld [vmem:[%s3 + $0x6c] sm:$0xf]
        %v1329 = vld [vmem:[%s3 + $0x70] sm:$0xf]
        %v1330 = vld [vmem:[%s3 + $0x74] sm:$0xf]
        %v1331 = vld [vmem:[%s3 + $0x78] sm:$0xf]
        %v1332 = vld [vmem:[%s3 + $0x7c] sm:$0xf]
        %v1365 = vunpack.c.l.b16 %v1301
        %v1366 = vunpack.c.l.b16 %v1302
        %v1367 = vunpack.c.l.b16 %v1303
        %v1368 = vunpack.c.l.b16 %v1304
        %v1369 = vunpack.c.l.b16 %v1305
        %v1370 = vunpack.c.l.b16 %v1306
        %v1371 = vunpack.c.l.b16 %v1307
        %v1372 = vunpack.c.l.b16 %v1308
        %v1373 = vunpack.c.l.b16 %v1309
        %v1374 = vunpack.c.l.b16 %v1310
        %v1375 = vunpack.c.l.b16 %v1311
        %v1376 = vunpack.c.l.b16 %v1312
        %v1377 = vunpack.c.l.b16 %v1313
        %v1378 = vunpack.c.l.b16 %v1314
        %v1379 = vunpack.c.l.b16 %v1315
        %v1380 = vunpack.c.l.b16 %v1316
        %v1381 = vunpack.c.l.b16 %v1317
        %v1382 = vunpack.c.l.b16 %v1318
        %v1383 = vunpack.c.l.b16 %v1319
        %v1384 = vunpack.c.l.b16 %v1320
        %v1385 = vunpack.c.l.b16 %v1321
        %v1386 = vunpack.c.l.b16 %v1322
        %v1387 = vunpack.c.l.b16 %v1323
        %v1388 = vunpack.c.l.b16 %v1324
        %v1389 = vunpack.c.l.b16 %v1325
        %v1390 = vunpack.c.l.b16 %v1326
        %v1391 = vunpack.c.l.b16 %v1327
        %v1392 = vunpack.c.l.b16 %v1328
        %v1393 = vunpack.c.l.b16 %v1329
        %v1394 = vunpack.c.l.b16 %v1330
        %v1395 = vunpack.c.l.b16 %v1331
        %v1396 = vunpack.c.l.b16 %v1332
        %v1397 = vpack.c.b16 %v1366, %v1365
        %v1398 = vpack.c.b16 %v1368, %v1367
        %v1399 = vpack.c.b16 %v1370, %v1369
        %v1400 = vpack.c.b16 %v1372, %v1371
        %v1401 = vpack.c.b16 %v1374, %v1373
        %v1402 = vpack.c.b16 %v1376, %v1375
        %v1403 = vpack.c.b16 %v1378, %v1377
        %v1404 = vpack.c.b16 %v1380, %v1379
        %v1405 = vpack.c.b16 %v1382, %v1381
        %v1406 = vpack.c.b16 %v1384, %v1383
        %v1407 = vpack.c.b16 %v1386, %v1385
        %v1408 = vpack.c.b16 %v1388, %v1387
        %v1409 = vpack.c.b16 %v1390, %v1389
        %v1410 = vpack.c.b16 %v1392, %v1391
        %v1411 = vpack.c.b16 %v1394, %v1393
        %v1412 = vpack.c.b16 %v1396, %v1395
        %1429 = vmatprep.subr.bf16.mxu0 0
        %1430 = vmatpush1.bf16.msra.mxu0 %v1397
        %1431 = vmatprep.subr.bf16.mxu0 0
        %1432 = vmatpush1.bf16.msra.mxu0 %v1398
        %1433 = vmatprep.subr.bf16.mxu0 0
        %1434 = vmatpush1.bf16.msra.mxu0 %v1399
        %1435 = vmatprep.subr.bf16.mxu0 0
        %1436 = vmatpush1.bf16.msra.mxu0 %v1400
        %1437 = vmatprep.subr.bf16.mxu0 0
        %1438 = vmatpush1.bf16.msra.mxu0 %v1401
        %1439 = vmatprep.subr.bf16.mxu0 0
        %1440 = vmatpush1.bf16.msra.mxu0 %v1402
        %1441 = vmatprep.subr.bf16.mxu0 0
        %1442 = vmatpush1.bf16.msra.mxu0 %v1403
        %1443 = vmatprep.subr.bf16.mxu0 0
        %1444 = vmatpush1.bf16.msra.mxu0 %v1404
        %1445 = vmatprep.subr.bf16.mxu0 0
        %1446 = vmatpush1.bf16.msra.mxu0 %v1405
        %1447 = vmatprep.subr.bf16.mxu0 0
        %1448 = vmatpush1.bf16.msra.mxu0 %v1406
        %1449 = vmatprep.subr.bf16.mxu0 0
        %1450 = vmatpush1.bf16.msra.mxu0 %v1407
        %1451 = vmatprep.subr.bf16.mxu0 0
        %1452 = vmatpush1.bf16.msra.mxu0 %v1408
        %1453 = vmatprep.subr.bf16.mxu0 0
        %1454 = vmatpush1.bf16.msra.mxu0 %v1409
        %1455 = vmatprep.subr.bf16.mxu0 0
        %1456 = vmatpush1.bf16.msra.mxu0 %v1410
        %1457 = vmatprep.subr.bf16.mxu0 0
        %1458 = vmatpush1.bf16.msra.mxu0 %v1411
        %1459 = vmatprep.subr.bf16.mxu0 0
        %1460 = vmatpush1.bf16.msra.mxu0 %v1412
        %1461 = vmatprep.mubr.bf16.mxu0 %v1286
        %1462 = vmatmul.mubr.bf16.gmra.mrb[0].mxu0 %v1285
        %v1463 = vpop.f32.mrb[0].mxu0
        %v1464 = vadd.f32 0.0, %v1463
        %v1465 = vpop.f32.mrb[0].mxu0
        %v1466 = vpop.f32.mrb[0].mxu0
        %v1467 = vadd.f32 0.0, %v1466
        %v1468 = vpop.f32.mrb[0].mxu0
        %1469 = vmatprep.mubr.bf16.mxu0 %v1288
        %1470 = vmatmul.mubr.bf16.gmra.mrb[0].mxu0 %v1287
        %v1471 = vpop.f32.mrb[0].mxu0
        %v1472 = vadd.f32 0.0, %v1471
        %v1473 = vpop.f32.mrb[0].mxu0
        %v1474 = vpop.f32.mrb[0].mxu0
        %v1475 = vadd.f32 0.0, %v1474
        %v1476 = vpop.f32.mrb[0].mxu0
        %1477 = vmatprep.mubr.bf16.mxu0 %v1290
        %1478 = vmatmul.mubr.bf16.gmra.mrb[0].mxu0 %v1289
        %v1479 = vpop.f32.mrb[0].mxu0
        %v1480 = vadd.f32 0.0, %v1479
        %v1481 = vpop.f32.mrb[0].mxu0
        %v1482 = vpop.f32.mrb[0].mxu0
        %v1483 = vadd.f32 0.0, %v1482
        %v1484 = vpop.f32.mrb[0].mxu0
        %1485 = vmatprep.mubr.bf16.mxu0 %v1292
        %1486 = vmatmul.mubr.bf16.gmra.mrb[0].mxu0 %v1291
        %v1487 = vpop.f32.mrb[0].mxu0
        %v1488 = vadd.f32 0.0, %v1487
        %v1489 = vpop.f32.mrb[0].mxu0
        %v1490 = vpop.f32.mrb[0].mxu0
        %v1491 = vadd.f32 0.0, %v1490
        %v1492 = vpop.f32.mrb[0].mxu0
        %1493 = vmatprep.mubr.bf16.mxu0 %v1294
        %1494 = vmatmul.mubr.bf16.gmra.mrb[0].mxu0 %v1293
        %v1495 = vpop.f32.mrb[0].mxu0
        %v1496 = vadd.f32 0.0, %v1495
        %v1497 = vpop.f32.mrb[0].mxu0
        %v1498 = vpop.f32.mrb[0].mxu0
        %v1499 = vadd.f32 0.0, %v1498
        %v1500 = vpop.f32.mrb[0].mxu0
        %1501 = vmatprep.mubr.bf16.mxu0 %v1296
        %1502 = vmatmul.mubr.bf16.gmra.mrb[0].mxu0 %v1295
        %v1503 = vpop.f32.mrb[0].mxu0
        %v1504 = vadd.f32 0.0, %v1503
        %v1505 = vpop.f32.mrb[0].mxu0
        %v1506 = vpop.f32.mrb[0].mxu0
        %v1507 = vadd.f32 0.0, %v1506
        %v1508 = vpop.f32.mrb[0].mxu0
        %1509 = vmatprep.mubr.bf16.mxu0 %v1298
        %1510 = vmatmul.mubr.bf16.gmra.mrb[0].mxu0 %v1297
        %v1511 = vpop.f32.mrb[0].mxu0
        %v1512 = vadd.f32 0.0, %v1511
        %v1513 = vpop.f32.mrb[0].mxu0
        %v1514 = vpop.f32.mrb[0].mxu0
        %v1515 = vadd.f32 0.0, %v1514
        %v1516 = vpop.f32.mrb[0].mxu0
        %1517 = vmatprep.mubr.bf16.mxu0 %v1300
        %1518 = vmatmul.mubr.bf16.gmra.mrb[0].mxu0 %v1299
        %v1519 = vpop.f32.mrb[0].mxu0
        %v1520 = vadd.f32 0.0, %v1519
        %v1521 = vpop.f32.mrb[0].mxu0
        %v1522 = vpop.f32.mrb[0].mxu0
        %v1523 = vadd.f32 0.0, %v1522
        %v1524 = vpop.f32.mrb[0].mxu0
        %1525 = vdwg.mxu0
        %1526 = vst [vmem:[%s206] sm:$0xff] %v1464
        %1527 = vst [vmem:[%s206 + $0x8] sm:$0xff] %v1467
        %1528 = vst [vmem:[%s206 + $0x10] sm:$0xff] %v1472
        %1529 = vst [vmem:[%s206 + $0x18] sm:$0xff] %v1475
        %1530 = vst [vmem:[%s206 + $0x20] sm:$0xff] %v1480
        %1531 = vst [vmem:[%s206 + $0x28] sm:$0xff] %v1483
        %1532 = vst [vmem:[%s206 + $0x30] sm:$0xff] %v1488
        %1533 = vst [vmem:[%s206 + $0x38] sm:$0xff] %v1491
        %1534 = vst [vmem:[%s206 + $0x40] sm:$0xff] %v1496
        %1535 = vst [vmem:[%s206 + $0x48] sm:$0xff] %v1499
        %1536 = vst [vmem:[%s206 + $0x50] sm:$0xff] %v1504
        %1537 = vst [vmem:[%s206 + $0x58] sm:$0xff] %v1507
        %1538 = vst [vmem:[%s206 + $0x60] sm:$0xff] %v1512
        %1539 = vst [vmem:[%s206 + $0x68] sm:$0xff] %v1515
        %1540 = vst [vmem:[%s206 + $0x70] sm:$0xff] %v1520
        %1541 = vst [vmem:[%s206 + $0x78] sm:$0xff] %v1523
        %s1542 = sand.u32 %s116, 1
        %s1543 = scalar_lea.sflag [#allocation4], %s1542
        %s1544 = sand.u32 %s116, 1
        %s1545 = smul.addr %s1544, 128
        %s1546 = scalar_lea.vmem [#allocation5], %s1545
        // Predicated region
        $region41: #{tpu_custom_call.1} parent=35 // pred_check
          %p1547 = pneg %p126
        $region42: #{tpu_custom_call.1} parent=35 // pred_check_branch
          %1549 = sbr.rel (%p1547) target = $region44
        $region43: #{tpu_custom_call.1} parent=35 // pred_region
          %s1550 = smul.u32 16, %s19
          %s1552 = ssub.s32 2048, 2048
          %1553 = vsyncadd %s1543, %s1552
          %s1554 = smul.addr %s1550, 128
          %s1555 = scalar_lea.hbm %s4, %s1554
          %s1556 = sshll.u32 %s1546, 4
          %s1557 = int_to_ptr.vmem [resolvable:$true] %s1556
          %1562 = dma.vmem_to_hbm [thread:$0]  %s1557, 2048, %s1555, %s1543, 128, 128, 8
        $region44: #{tpu_custom_call.1} parent=35 // pred_fallthru
          _
      $region36: #{tpu_custom_call.1} parent=5 // pred_fallthru
        _
      %p1563 = scmp.le.s32.totalorder 2, %s14
      // Predicated region
      $region45: #{tpu_custom_call.1} parent=5 // pred_check
        %p1564 = pneg %p1563
      $region46: #{tpu_custom_call.1} parent=5 // pred_check_branch
        %1566 = sbr.rel (%p1564) target = $region48
      $region47: #{tpu_custom_call.1} parent=5 // pred_region
        %s1567 = ssub.s32 %s14, 2
        // Predicated region
        $region49: #{tpu_custom_call.1} parent=47 // pred_check
          %p1568 = pneg %p132
        $region50: #{tpu_custom_call.1} parent=47 // pred_check_branch
          %1570 = sbr.rel (%p1568) target = $region52
        $region51: #{tpu_custom_call.1} parent=47 // pred_region
          %s1571 = sand.u32 %s117, 1
          %s1572 = scalar_lea.sflag [#allocation4], %s1571
          %s1573 = sand.u32 %s117, 1
          %s1574 = smul.addr %s1573, 128
          %s1575 = scalar_lea.vmem [#allocation5], %s1574
          %1576 = dma.done %s1572, 2048
        $region52: #{tpu_custom_call.1} parent=47 // pred_fallthru
          _
      $region48: #{tpu_custom_call.1} parent=5 // pred_fallthru
        _
    $region6: #{tpu_custom_call.1} parent=1 // loop_footer
      %s18 = sadd.s32 1, %s14
    $region7: #{tpu_custom_call.1} parent=1 // loop_footer_branch
      %13 = sbr.rel target = $region3
    $region8: #{tpu_custom_call.1} parent=1 // loop_exit
      _
    %1577 = vsyncpa [#allocation3], 1
    %s1578 = scalar_lea.sflag [#allocation3], 1
    %1579 = vsyncpa %s1578, 1
    %1580 = vsyncpa [#allocation4], 1
    %s1581 = scalar_lea.sflag [#allocation4], 1
    %1582 = vsyncpa %s1581, 1

</llo_original>
